<compile_context>
chip_gen: v5e
topology: v5e:2x2
jax: 0.10.0
libtpu: 0.0.40
codegen_flags: <defaults>
</compile_context>

<pallas_src>
import jax
import jax.numpy as jnp
from jax.experimental import pallas as pl
from jax.experimental.pallas import tpu as pltpu

NEG_SLOPE = 0.01   # nn.LeakyReLU default
BN_EPS = 1e-5      # nn.BatchNorm1d default
K = 5              # conv5 kernel size
PAD = K // 2       # padding = 2 (dilation = 1)


def _leaky(x):
    # max(x, a*x) == LeakyReLU(x) for 0 < a < 1.
    return jnp.maximum(x, NEG_SLOPE * x)


def bob_block_kernel(x_ref, w1_ref, w2_ref, bias_ref, o_ref):
    # x_ref:   (B_blk, C, L)    storage dtype (f32 or bf16)
    # w1_ref:  (C, K*C), w2_ref: (C, K*C)  storage dtype, row order (k, cin),
    #          BatchNorm scale already folded into the rows.
    # bias_ref:(C, 2) f32 columns = [b1, b2]  (folded BatchNorm biases)
    # o_ref:   (B_blk, C, L)
    b_blk, c, L = x_ref.shape
    BL = b_blk * L
    mm_dtype = w1_ref.dtype

    b1 = bias_ref[:, 0:1]          # (C, 1) f32
    b2 = bias_ref[:, 1:2]
    w1 = w1_ref[...]
    w2 = w2_ref[...]

    # Lane-concatenate the batch block: (C, B_blk*L), f32 (also the residual).
    x_cat = jnp.concatenate(
        [x_ref[b].astype(jnp.float32) for b in range(b_blk)], axis=1)

    # Per-tap validity masks, built once and reused by both convs.
    # `lane % L` masks both the global roll wrap-around and the inter-batch
    # boundaries introduced by the lane concatenation.
    lane = jax.lax.broadcasted_iota(jnp.int32, (c, BL), 1) % L
    keep = {}
    for k in range(K):
        s = PAD - k
        if s > 0:
            keep[k] = lane >= s
        elif s < 0:
            keep[k] = lane < (L + s)

    def tap_stack(h32):
        # h32: (C, B_blk*L) f32 -> (K*C, B_blk*L): the K shifted copies stacked
        # along sublanes.  Rolls run on the XLU (idle otherwise) instead of
        # burning vld/vst slots on padded-scratch traffic.
        parts = []
        for k in range(K):
            s = PAD - k
            if s == 0:
                parts.append(h32)
            else:
                r = pltpu.roll(h32, s % BL, axis=1)
                parts.append(jnp.where(keep[k], r, 0.0))
        return jnp.concatenate(parts, axis=0)

    # conv1 (k=5, "same", stride 1, no bias) + BN1 scale, as ONE MXU matmul
    # over the whole batch block; f32 accumulation.
    z1 = jnp.dot(w1, tap_stack(x_cat).astype(mm_dtype),
                 preferred_element_type=jnp.float32)          # (C, B_blk*L)
    h1 = _leaky(z1 + b1)                                      # BN1 bias + LeakyReLU

    # conv2 + BN2 scale.
    z2 = jnp.dot(w2, tap_stack(h1).astype(mm_dtype),
                 preferred_element_type=jnp.float32)
    out = _leaky(z2 + b2) + x_cat                             # BN2 bias + AF + residual
    out = out.astype(o_ref.dtype)

    # Split the lane-concatenated result back per batch element (static,
    # lane-aligned slices when L % 128 == 0).
    for b in range(b_blk):
        o_ref[b] = out[:, b * L:(b + 1) * L]


def _pick_block_batch(n, bytes_per_sample, max_block_bytes=2 << 20, min_steps=2):
    """Largest divisor of n whose x-block fits the byte budget while (when
    possible) leaving >= min_steps grid steps so both v7x TensorCores get
    work."""
    best = 1
    for d in range(1, n + 1):
        if n % d or d * bytes_per_sample > max_block_bytes:
            continue
        if (n // d) >= min_steps or n < min_steps:
            best = d
    return best


def bob_block(x, w1, bn1, w2, bn2, *, compute_dtype=None, block_batch=None):
    """x: (N, Cin, L).  w1: (Cout, Cin, K), w2: (Cout, Cout, K).
    bn1/bn2: tuples (gamma, beta, running_mean, running_var), each (Cout,).
    Requires Cin == Cout (downsample=None, stride=1).
    compute_dtype: storage / MXU-operand dtype (f32 default, bf16 for v6e/v7x);
    accumulation and the bias/LeakyReLU/residual epilogue are always f32."""
    N, cin, L = x.shape
    cout, cin_w, kk = w1.shape
    assert kk == K and cin_w == cin
    assert cin == cout, "identity add requires inplanes == planes"
    if compute_dtype is None:
        compute_dtype = x.dtype

    # Fold eval-mode BatchNorm into per-channel scale/bias; fold the scale
    # into the conv weights (exact, one-time parameter transform).
    def fold(bn):
        g, b, m, v = (jnp.asarray(t, jnp.float32) for t in bn)
        s = g * jax.lax.rsqrt(v + BN_EPS)
        return s, b - m * s

    s1, b1 = fold(bn1)
    s2, b2 = fold(bn2)
    bias_tab = jnp.stack([b1, b2], axis=1)                        # (Cout, 2) f32

    # (Cout, Cin, K) -> (Cout, K*Cin), row order (k, cin) to match the
    # in-kernel tap stacking order; BN scale folded into the Cout rows.
    def flatten_w(w, s):
        w = jnp.asarray(w, jnp.float32) * s[:, None, None]
        return jnp.transpose(w, (0, 2, 1)).reshape(w.shape[0], -1).astype(compute_dtype)

    w1f = flatten_w(w1, s1)                                       # (Cout, K*Cin)
    w2f = flatten_w(w2, s2)                                       # (Cout, K*Cout)
    xs = x.astype(compute_dtype)

    if block_batch is None:
        block_batch = _pick_block_batch(N, cin * L * xs.dtype.itemsize)
    assert N % block_batch == 0
    grid = (N // block_batch,)

    return pl.pallas_call(
        bob_block_kernel,
        out_shape=jax.ShapeDtypeStruct((N, cout, L), compute_dtype),
        grid_spec=pltpu.PrefetchScalarGridSpec(
            num_scalar_prefetch=0,
            grid=grid,
            in_specs=[
                pl.BlockSpec((block_batch, cin, L), lambda i: (i, 0, 0)),   # x block
                pl.BlockSpec((cout, K * cin), lambda i: (0, 0)),            # w1 (resident)
                pl.BlockSpec((cout, K * cout), lambda i: (0, 0)),           # w2 (resident)
                pl.BlockSpec((cout, 2), lambda i: (0, 0)),                  # folded BN biases
            ],
            out_specs=pl.BlockSpec((block_batch, cout, L), lambda i: (i, 0, 0)),
        ),
        compiler_params=pltpu.CompilerParams(dimension_semantics=("parallel",)),
    )(xs, w1f, w2f, bias_tab)


def bob_block_reference(x, w1, bn1, w2, bn2):
    """Plain-JAX reference matching the PyTorch forward (eval-mode BN)."""
    def conv(a, w):
        return jax.lax.conv_general_dilated(
            a, w, window_strides=(1,), padding=((PAD, PAD),),
            dimension_numbers=("NCH", "OIH", "NCH"))

    def bn(a, p):
        g, b, m, v = p
        return (g[None, :, None] * (a - m[None, :, None])
                / jnp.sqrt(v[None, :, None] + BN_EPS) + b[None, :, None])

    def lrelu(a):
        return jnp.where(a > 0, a, NEG_SLOPE * a)

    out = lrelu(bn(conv(x, w1), bn1))
    out = lrelu(bn(conv(out, w2), bn2))
    return out + x


if __name__ == "__main__":
    # inplanes = planes = 8, stride = 1, downsample = None
    # TODO(synk): nn.Dropout(p=0.3) is constructed in __init__ but never used
    # in forward(), so it is intentionally not implemented.
    N, C, L = 8, 8, 128
    key = jax.random.PRNGKey(0)
    kx, kw1, kw2, kg1, kb1, km1, kv1, kg2, kb2, km2, kv2 = jax.random.split(key, 11)

    x = jax.random.normal(kx, (N, C, L), dtype=jnp.float32)
    w1 = jax.random.normal(kw1, (C, C, K), dtype=jnp.float32) * 0.1
    w2 = jax.random.normal(kw2, (C, C, K), dtype=jnp.float32) * 0.1
    bn1 = (jax.random.uniform(kg1, (C,), minval=0.5, maxval=1.5),
           jax.random.normal(kb1, (C,)) * 0.1,
           jax.random.normal(km1, (C,)) * 0.1,
           jax.random.uniform(kv1, (C,), minval=0.5, maxval=1.5))
    bn2 = (jax.random.uniform(kg2, (C,), minval=0.5, maxval=1.5),
           jax.random.normal(kb2, (C,)) * 0.1,
           jax.random.normal(km2, (C,)) * 0.1,
           jax.random.uniform(kv2, (C,), minval=0.5, maxval=1.5))

    ref = jax.block_until_ready(bob_block_reference(x, w1, bn1, w2, bn2))

    # f32 path (v5e-friendly: all elementwise math in f32).
    out = jax.block_until_ready(bob_block(x, w1, bn1, w2, bn2))
    assert out.shape == (N, C, L)
    err = float(jnp.max(jnp.abs(out - ref)))
    assert jnp.allclose(out, ref, atol=2e-4, rtol=2e-4), err

    # bf16 storage / bf16 MXU operands (v6e/v7x); f32 accumulation and f32
    # epilogue inside the kernel, so only storage precision is reduced.
    out_bf = jax.block_until_ready(
        bob_block(x, w1, bn1, w2, bn2, compute_dtype=jnp.bfloat16))
    err_bf = float(jnp.max(jnp.abs(out_bf.astype(jnp.float32) - ref)))
    assert jnp.allclose(out_bf.astype(jnp.float32), ref, atol=1e-1, rtol=1e-1), err_bf

    print("KERNEL_OK")
</pallas_src>

<mosaic_0001>
module attributes {stable_mosaic.version = 11 : i64} {
  func.func @bob_block_kernel(%arg0: i32, %arg1: memref<4x8x128xf32, #tpu.memory_space<vmem>>, %arg2: memref<8x40xf32, #tpu.memory_space<vmem>>, %arg3: memref<8x40xf32, #tpu.memory_space<vmem>>, %arg4: memref<8x2xf32, #tpu.memory_space<vmem>>, %arg5: memref<4x8x128xf32, #tpu.memory_space<vmem>>) attributes {dimension_semantics = [#tpu.dimension_semantics<parallel>], iteration_bounds = array<i64: 2>, scalar_prefetch = 0 : i64, scratch_operands = 0 : i64, tpu.core_type = #tpu.core_type<tc>, window_params = [{transform_indices = @transform_0, window_bounds = array<i64: 4, 8, 128>}, {pipeline_mode = #tpu.pipeline_mode<synchronous>, transform_indices = @transform_1, window_bounds = array<i64: 8, 40>}, {pipeline_mode = #tpu.pipeline_mode<synchronous>, transform_indices = @transform_2, window_bounds = array<i64: 8, 40>}, {pipeline_mode = #tpu.pipeline_mode<synchronous>, transform_indices = @transform_3, window_bounds = array<i64: 8, 2>}, {transform_indices = @transform_4, window_bounds = array<i64: 4, 8, 128>}]} {
    %c0 = arith.constant 0 : index
    %c0_0 = arith.constant 0 : index
    %0 = vector.load %arg4[%c0, %c0_0] : memref<8x2xf32, #tpu.memory_space<vmem>>, vector<8x1xf32>
    %c0_1 = arith.constant 0 : index
    %c1 = arith.constant 1 : index
    %1 = vector.load %arg4[%c0_1, %c1] : memref<8x2xf32, #tpu.memory_space<vmem>>, vector<8x1xf32>
    %c0_2 = arith.constant 0 : index
    %c0_3 = arith.constant 0 : index
    %2 = vector.load %arg2[%c0_2, %c0_3] : memref<8x40xf32, #tpu.memory_space<vmem>>, vector<8x40xf32>
    %c0_4 = arith.constant 0 : index
    %c0_5 = arith.constant 0 : index
    %3 = vector.load %arg3[%c0_4, %c0_5] : memref<8x40xf32, #tpu.memory_space<vmem>>, vector<8x40xf32>
    %c0_6 = arith.constant 0 : index
    %c0_7 = arith.constant 0 : index
    %c0_8 = arith.constant 0 : index
    %4 = vector.load %arg1[%c0_6, %c0_7, %c0_8] : memref<4x8x128xf32, #tpu.memory_space<vmem>>, vector<1x8x128xf32>
    %5 = vector.shape_cast %4 : vector<1x8x128xf32> to vector<8x128xf32>
    %c1_9 = arith.constant 1 : index
    %c0_10 = arith.constant 0 : index
    %c0_11 = arith.constant 0 : index
    %6 = vector.load %arg1[%c1_9, %c0_10, %c0_11] : memref<4x8x128xf32, #tpu.memory_space<vmem>>, vector<1x8x128xf32>
    %7 = vector.shape_cast %6 : vector<1x8x128xf32> to vector<8x128xf32>
    %c2 = arith.constant 2 : index
    %c0_12 = arith.constant 0 : index
    %c0_13 = arith.constant 0 : index
    %8 = vector.load %arg1[%c2, %c0_12, %c0_13] : memref<4x8x128xf32, #tpu.memory_space<vmem>>, vector<1x8x128xf32>
    %9 = vector.shape_cast %8 : vector<1x8x128xf32> to vector<8x128xf32>
    %c3 = arith.constant 3 : index
    %c0_14 = arith.constant 0 : index
    %c0_15 = arith.constant 0 : index
    %10 = vector.load %arg1[%c3, %c0_14, %c0_15] : memref<4x8x128xf32, #tpu.memory_space<vmem>>, vector<1x8x128xf32>
    %11 = vector.shape_cast %10 : vector<1x8x128xf32> to vector<8x128xf32>
    %12 = tpu.concatenate %5, %7, %9, %11 in 1 : vector<8x128xf32>, vector<8x128xf32>, vector<8x128xf32>, vector<8x128xf32> -> vector<8x512xf32>
    %13 = tpu.iota {dimensions = array<i32: 1>} : vector<8x512xi32>
    %c128_i32 = arith.constant 128 : i32
    %c0_i32 = arith.constant 0 : i32
    %14 = arith.cmpi eq, %c128_i32, %c0_i32 : i32
    %c1_i32 = arith.constant 1 : i32
    %15 = arith.select %14, %c1_i32, %c128_i32 : i32
    %16 = vector.broadcast %15 : i32 to vector<8x512xi32>
    %17 = arith.remsi %13, %16 : vector<8x512xi32>
    %c0_i32_16 = arith.constant 0 : i32
    %18 = vector.broadcast %c0_i32_16 : i32 to vector<8x512xi32>
    %19 = arith.cmpi ne, %17, %18 : vector<8x512xi32>
    %c0_i32_17 = arith.constant 0 : i32
    %20 = vector.broadcast %c0_i32_17 : i32 to vector<8x512xi32>
    %21 = arith.cmpi slt, %17, %20 : vector<8x512xi32>
    %c0_i32_18 = arith.constant 0 : i32
    %22 = arith.cmpi slt, %15, %c0_i32_18 : i32
    %23 = vector.broadcast %22 : i1 to vector<8x512xi1>
    %24 = vector.broadcast %23 : vector<8x512xi1> to vector<8x512xi1>
    %25 = arith.xori %21, %24 : vector<8x512xi1>
    %26 = arith.andi %25, %19 : vector<8x512xi1>
    %27 = vector.broadcast %15 : i32 to vector<8x512xi32>
    %28 = arith.addi %17, %27 : vector<8x512xi32>
    %29 = arith.select %26, %28, %17 : vector<8x512xi1>, vector<8x512xi32>
    %c2_i32 = arith.constant 2 : i32
    %30 = vector.broadcast %c2_i32 : i32 to vector<8x512xi32>
    %31 = arith.cmpi sge, %29, %30 : vector<8x512xi32>
    %c1_i32_19 = arith.constant 1 : i32
    %32 = vector.broadcast %c1_i32_19 : i32 to vector<8x512xi32>
    %33 = arith.cmpi sge, %29, %32 : vector<8x512xi32>
    %c127_i32 = arith.constant 127 : i32
    %34 = vector.broadcast %c127_i32 : i32 to vector<8x512xi32>
    %35 = arith.cmpi slt, %29, %34 : vector<8x512xi32>
    %c126_i32 = arith.constant 126 : i32
    %36 = vector.broadcast %c126_i32 : i32 to vector<8x512xi32>
    %37 = arith.cmpi slt, %29, %36 : vector<8x512xi32>
    %c2_i32_20 = arith.constant 2 : i32
    %38 = tpu.dynamic_rotate %12 by %c2_i32_20 dim 1 : vector<8x512xf32>, i32 -> vector<8x512xf32>
    %cst = arith.constant 0.000000e+00 : f32
    %39 = vector.broadcast %cst : f32 to vector<8x512xf32>
    %40 = arith.select %31, %38, %39 : vector<8x512xi1>, vector<8x512xf32>
    %c1_i32_21 = arith.constant 1 : i32
    %41 = tpu.dynamic_rotate %12 by %c1_i32_21 dim 1 : vector<8x512xf32>, i32 -> vector<8x512xf32>
    %cst_22 = arith.constant 0.000000e+00 : f32
    %42 = vector.broadcast %cst_22 : f32 to vector<8x512xf32>
    %43 = arith.select %33, %41, %42 : vector<8x512xi1>, vector<8x512xf32>
    %c511_i32 = arith.constant 511 : i32
    %44 = tpu.dynamic_rotate %12 by %c511_i32 dim 1 : vector<8x512xf32>, i32 -> vector<8x512xf32>
    %cst_23 = arith.constant 0.000000e+00 : f32
    %45 = vector.broadcast %cst_23 : f32 to vector<8x512xf32>
    %46 = arith.select %35, %44, %45 : vector<8x512xi1>, vector<8x512xf32>
    %c510_i32 = arith.constant 510 : i32
    %47 = tpu.dynamic_rotate %12 by %c510_i32 dim 1 : vector<8x512xf32>, i32 -> vector<8x512xf32>
    %cst_24 = arith.constant 0.000000e+00 : f32
    %48 = vector.broadcast %cst_24 : f32 to vector<8x512xf32>
    %49 = arith.select %37, %47, %48 : vector<8x512xi1>, vector<8x512xf32>
    %50 = tpu.concatenate %40, %43, %12, %46, %49 in 0 : vector<8x512xf32>, vector<8x512xf32>, vector<8x512xf32>, vector<8x512xf32>, vector<8x512xf32> -> vector<40x512xf32>
    %cst_25 = arith.constant dense<0.000000e+00> : vector<8x512xf32>
    %51 = tpu.matmul %2, %50, %cst_25 {dimension_numbers = #tpu.dot_dimension_numbers<[1], [0], [0], [1], [0, 0, 1, 1], [], []>} : vector<8x40xf32>, vector<40x512xf32>, vector<8x512xf32> -> vector<8x512xf32>
    %52 = vector.broadcast %0 : vector<8x1xf32> to vector<8x512xf32>
    %53 = arith.addf %51, %52 : vector<8x512xf32>
    %cst_26 = arith.constant 0.00999999977 : f32
    %54 = vector.broadcast %cst_26 : f32 to vector<8x512xf32>
    %55 = arith.mulf %54, %53 : vector<8x512xf32>
    %56 = arith.maximumf %53, %55 : vector<8x512xf32>
    %c2_i32_27 = arith.constant 2 : i32
    %57 = tpu.dynamic_rotate %56 by %c2_i32_27 dim 1 : vector<8x512xf32>, i32 -> vector<8x512xf32>
    %cst_28 = arith.constant 0.000000e+00 : f32
    %58 = vector.broadcast %cst_28 : f32 to vector<8x512xf32>
    %59 = arith.select %31, %57, %58 : vector<8x512xi1>, vector<8x512xf32>
    %c1_i32_29 = arith.constant 1 : i32
    %60 = tpu.dynamic_rotate %56 by %c1_i32_29 dim 1 : vector<8x512xf32>, i32 -> vector<8x512xf32>
    %cst_30 = arith.constant 0.000000e+00 : f32
    %61 = vector.broadcast %cst_30 : f32 to vector<8x512xf32>
    %62 = arith.select %33, %60, %61 : vector<8x512xi1>, vector<8x512xf32>
    %c511_i32_31 = arith.constant 511 : i32
    %63 = tpu.dynamic_rotate %56 by %c511_i32_31 dim 1 : vector<8x512xf32>, i32 -> vector<8x512xf32>
    %cst_32 = arith.constant 0.000000e+00 : f32
    %64 = vector.broadcast %cst_32 : f32 to vector<8x512xf32>
    %65 = arith.select %35, %63, %64 : vector<8x512xi1>, vector<8x512xf32>
    %c510_i32_33 = arith.constant 510 : i32
    %66 = tpu.dynamic_rotate %56 by %c510_i32_33 dim 1 : vector<8x512xf32>, i32 -> vector<8x512xf32>
    %cst_34 = arith.constant 0.000000e+00 : f32
    %67 = vector.broadcast %cst_34 : f32 to vector<8x512xf32>
    %68 = arith.select %37, %66, %67 : vector<8x512xi1>, vector<8x512xf32>
    %69 = tpu.concatenate %59, %62, %56, %65, %68 in 0 : vector<8x512xf32>, vector<8x512xf32>, vector<8x512xf32>, vector<8x512xf32>, vector<8x512xf32> -> vector<40x512xf32>
    %cst_35 = arith.constant dense<0.000000e+00> : vector<8x512xf32>
    %70 = tpu.matmul %3, %69, %cst_35 {dimension_numbers = #tpu.dot_dimension_numbers<[1], [0], [0], [1], [0, 0, 1, 1], [], []>} : vector<8x40xf32>, vector<40x512xf32>, vector<8x512xf32> -> vector<8x512xf32>
    %71 = vector.broadcast %1 : vector<8x1xf32> to vector<8x512xf32>
    %72 = arith.addf %70, %71 : vector<8x512xf32>
    %cst_36 = arith.constant 0.00999999977 : f32
    %73 = vector.broadcast %cst_36 : f32 to vector<8x512xf32>
    %74 = arith.mulf %73, %72 : vector<8x512xf32>
    %75 = arith.maximumf %72, %74 : vector<8x512xf32>
    %76 = arith.addf %75, %12 : vector<8x512xf32>
    %77 = vector.extract_strided_slice %76 {offsets = [0, 0], sizes = [8, 128], strides = [1, 1]} : vector<8x512xf32> to vector<8x128xf32>
    %c0_37 = arith.constant 0 : index
    %c0_38 = arith.constant 0 : index
    %c0_39 = arith.constant 0 : index
    %78 = vector.load %arg5[%c0_37, %c0_38, %c0_39] : memref<4x8x128xf32, #tpu.memory_space<vmem>>, vector<1x8x128xf32>
    %79 = vector.shape_cast %78 : vector<1x8x128xf32> to vector<8x128xf32>
    %80 = vector.shape_cast %77 : vector<8x128xf32> to vector<1x8x128xf32>
    tpu.vector_store %arg5[%c0_37, %c0_38, %c0_39], %80 {strides = array<i32>} : memref<4x8x128xf32, #tpu.memory_space<vmem>>, vector<1x8x128xf32>,
    %81 = vector.extract_strided_slice %76 {offsets = [0, 128], sizes = [8, 128], strides = [1, 1]} : vector<8x512xf32> to vector<8x128xf32>
    %c1_40 = arith.constant 1 : index
    %c0_41 = arith.constant 0 : index
    %c0_42 = arith.constant 0 : index
    %82 = vector.load %arg5[%c1_40, %c0_41, %c0_42] : memref<4x8x128xf32, #tpu.memory_space<vmem>>, vector<1x8x128xf32>
    %83 = vector.shape_cast %82 : vector<1x8x128xf32> to vector<8x128xf32>
    %84 = vector.shape_cast %81 : vector<8x128xf32> to vector<1x8x128xf32>
    tpu.vector_store %arg5[%c1_40, %c0_41, %c0_42], %84 {strides = array<i32>} : memref<4x8x128xf32, #tpu.memory_space<vmem>>, vector<1x8x128xf32>,
    %85 = vector.extract_strided_slice %76 {offsets = [0, 256], sizes = [8, 128], strides = [1, 1]} : vector<8x512xf32> to vector<8x128xf32>
    %c2_43 = arith.constant 2 : index
    %c0_44 = arith.constant 0 : index
    %c0_45 = arith.constant 0 : index
    %86 = vector.load %arg5[%c2_43, %c0_44, %c0_45] : memref<4x8x128xf32, #tpu.memory_space<vmem>>, vector<1x8x128xf32>
    %87 = vector.shape_cast %86 : vector<1x8x128xf32> to vector<8x128xf32>
    %88 = vector.shape_cast %85 : vector<8x128xf32> to vector<1x8x128xf32>
    tpu.vector_store %arg5[%c2_43, %c0_44, %c0_45], %88 {strides = array<i32>} : memref<4x8x128xf32, #tpu.memory_space<vmem>>, vector<1x8x128xf32>,
    %89 = vector.extract_strided_slice %76 {offsets = [0, 384], sizes = [8, 128], strides = [1, 1]} : vector<8x512xf32> to vector<8x128xf32>
    %c3_46 = arith.constant 3 : index
    %c0_47 = arith.constant 0 : index
    %c0_48 = arith.constant 0 : index
    %90 = vector.load %arg5[%c3_46, %c0_47, %c0_48] : memref<4x8x128xf32, #tpu.memory_space<vmem>>, vector<1x8x128xf32>
    %91 = vector.shape_cast %90 : vector<1x8x128xf32> to vector<8x128xf32>
    %92 = vector.shape_cast %89 : vector<8x128xf32> to vector<1x8x128xf32>
    tpu.vector_store %arg5[%c3_46, %c0_47, %c0_48], %92 {strides = array<i32>} : memref<4x8x128xf32, #tpu.memory_space<vmem>>, vector<1x8x128xf32>,
    return
  }
  func.func @transform_0(%arg0: i32) -> (i32, i32, i32) {
    %c0_i32 = arith.constant 0 : i32
    %c0_i32_0 = arith.constant 0 : i32
    %c0_i32_1 = arith.constant 0 : i32
    return %arg0, %c0_i32, %c0_i32_0 : i32, i32, i32
  }
  func.func @transform_1(%arg0: i32) -> (i32, i32) {
    %c0_i32 = arith.constant 0 : i32
    %c0_i32_0 = arith.constant 0 : i32
    %c0_i32_1 = arith.constant 0 : i32
    return %c0_i32, %c0_i32_0 : i32, i32
  }
  func.func @transform_2(%arg0: i32) -> (i32, i32) {
    %c0_i32 = arith.constant 0 : i32
    %c0_i32_0 = arith.constant 0 : i32
    %c0_i32_1 = arith.constant 0 : i32
    return %c0_i32, %c0_i32_0 : i32, i32
  }
  func.func @transform_3(%arg0: i32) -> (i32, i32) {
    %c0_i32 = arith.constant 0 : i32
    %c0_i32_0 = arith.constant 0 : i32
    %c0_i32_1 = arith.constant 0 : i32
    return %c0_i32, %c0_i32_0 : i32, i32
  }
  func.func @transform_4(%arg0: i32) -> (i32, i32, i32) {
    %c0_i32 = arith.constant 0 : i32
    %c0_i32_0 = arith.constant 0 : i32
    %c0_i32_1 = arith.constant 0 : i32
    return %arg0, %c0_i32, %c0_i32_0 : i32, i32, i32
  }
}

</mosaic_0001>

<llo_original>
// kernel: tpu_custom_call.1
$region0: #{tpu_custom_call.1}
  #allocation0 [shape = 'u32[]', space=smem, size = 0x4, offset = 0x4, fixed_abs, tag = 'smem constant byte address 0x4 - core index']
  #allocation1 [shape = 'u32[72,128]{1,0:T(1,128)}', space=vmem, size = 0x9000, scoped, tag = 'internal scratch']
  %s0 = inlined_call_operand.hbm [shape: f32[8,8,128], index: 0, kind: input, shape index: {}]
  %s1 = inlined_call_operand.vmem [shape: f32[8,40], index: 1, kind: input, shape index: {}]
  %s2 = inlined_call_operand.hbm [shape: f32[8,40], index: 2, kind: input, shape index: {}]
  %s3 = inlined_call_operand.vmem [shape: f32[8,2], index: 3, kind: input, shape index: {}]
  %s4 = inlined_call_operand.hbm [shape: f32[8,8,128], index: 4, kind: output, shape index: {}]
  %s5 = sld [smem:[#allocation0]]
  $region57: #{tpu_custom_call.1} parent=0
    _
  %s7 = ssub.s32 1, %s5
  %s8 = scalar_select 0, %s7, %s5
  $region1: #{tpu_custom_call.1} parent=0
    #allocation2 [shape = 'u8[32768]{0}', space=vmem, size = 0x8000, scoped, tag = 'input window, operand 0']
    #allocation3 [shape = 's32[2]{0}', space=sflag, size = 0x8, scoped, tag = 'scoped memory for tpu_custom_call.1']
    #allocation4 [shape = 's32[2]{0}', space=sflag, size = 0x8, scoped, tag = 'scoped memory for tpu_custom_call.1']
    #allocation5 [shape = 'u8[4096]{0}', space=vmem, size = 0x1000, scoped, tag = 'input window, operand 2, single buffered']
    #allocation6 [shape = 's32[1]{0}', space=sflag, size = 0x4, scoped, tag = 'scoped memory for tpu_custom_call.1']
    #allocation7 [shape = 'u8[32768]{0}', space=vmem, size = 0x8000, scoped, tag = 'output window, operand 0']
    %9 = vsyncpa [#allocation3], 0
    %s10 = scalar_lea.sflag [#allocation3], 1
    %11 = vsyncpa %s10, 0
    %12 = vsyncpa [#allocation6], 0
    %13 = vsyncpa [#allocation4], 0
    %s14 = scalar_lea.sflag [#allocation4], 1
    %15 = vsyncpa %s14, 0
    loop: start=0, step=1, limit=4
    $region2: #{tpu_custom_call.1} parent=1 // loop_pre_header
      _
    $region3: #{tpu_custom_call.1} parent=1 // loop_header
      %s17 = sphi 0, %s21
      %p18 = scmp.ge.s32.totalorder %s17, 4
      %s27 = sphi 0, %s29
      %s30 = sphi 0, %s27
      %s31 = sphi 0, %s30
      %s47 = sphi 0, %s31
      %s51 = sphi 0, %s51
      %s53 = sphi 0, %s51
      %s54 = sphi 0, %s53
      %s68 = sphi 0, %s54
      %s72 = sphi 0, %s72
      %s74 = sphi 0, %s72
      %s75 = sphi 0, %s74
      %s89 = sphi 0, %s75
      %s93 = sphi 0, %s93
      %s95 = sphi 0, %s93
      %s96 = sphi 0, %s95
      %s110 = sphi 0, %s96
      %s116 = sphi 0, %s118
      %s119 = sphi 0, %s116
      %s120 = sphi 0, %s119
      %s136 = sphi 0, %s120
    $region4: #{tpu_custom_call.1} parent=1 // loop_header_branch
      %20 = sbr.rel (%p18) target = $region8
    $region5: #{tpu_custom_call.1} parent=1 // loop_body
      %s22 = ssub.s32 %s17, 1
      %s23 = ssub.s32 %s17, 2
      %s24 = sadd.s32 %s17, 1
      %s25 = ssub.s32 %s17, %s24
      %p26 = scmp.eq.s32.totalorder %s25, 0
      %s28 = sadd.s32 %s27, 1
      %s29 = scalar_select %p26, %s27, %s28
      %p32 = pneg %p26
      %p33 = scmp.eq.s32.totalorder %s17, 1
      %p34 = por %p32, %p33
      %p35 = scmp.ne.s32.totalorder %s27, %s30
      %p36 = scmp.eq.s32.totalorder %s17, 0
      %p37 = por %p35, %p36
      %p38 = scmp.ne.s32.totalorder %s27, %s30
      %p39 = scmp.eq.s32.totalorder %s22, 1
      %p40 = por %p38, %p39
      %p41 = scmp.ne.s32.totalorder %s30, %s31
      %p42 = scmp.eq.s32.totalorder %s22, 0
      %p43 = por %p41, %p42
      %p44 = scmp.ne.s32.totalorder %s30, %s31
      %p45 = scmp.eq.s32.totalorder %s23, 1
      %p46 = por %p44, %p45
      %p48 = scmp.ne.s32.totalorder %s31, %s47
      %p49 = scmp.eq.s32.totalorder %s23, 0
      %p50 = por %p48, %p49
      %s52 = sadd.s32 %s51, 1
      %p55 = scmp.eq.s32.totalorder %s17, 1
      %p56 = scmp.ne.s32.totalorder %s51, %s53
      %p57 = scmp.eq.s32.totalorder %s17, 0
      %p58 = por %p56, %p57
      %p59 = scmp.ne.s32.totalorder %s51, %s53
      %p60 = scmp.eq.s32.totalorder %s22, 1
      %p61 = por %p59, %p60
      %p62 = scmp.ne.s32.totalorder %s53, %s54
      %p63 = scmp.eq.s32.totalorder %s22, 0
      %p64 = por %p62, %p63
      %p65 = scmp.ne.s32.totalorder %s53, %s54
      %p66 = scmp.eq.s32.totalorder %s23, 1
      %p67 = por %p65, %p66
      %p69 = scmp.ne.s32.totalorder %s54, %s68
      %p70 = scmp.eq.s32.totalorder %s23, 0
      %p71 = por %p69, %p70
      %s73 = sadd.s32 %s72, 1
      %p76 = scmp.eq.s32.totalorder %s17, 1
      %p77 = scmp.ne.s32.totalorder %s72, %s74
      %p78 = scmp.eq.s32.totalorder %s17, 0
      %p79 = por %p77, %p78
      %p80 = scmp.ne.s32.totalorder %s72, %s74
      %p81 = scmp.eq.s32.totalorder %s22, 1
      %p82 = por %p80, %p81
      %p83 = scmp.ne.s32.totalorder %s74, %s75
      %p84 = scmp.eq.s32.totalorder %s22, 0
      %p85 = por %p83, %p84
      %p86 = scmp.ne.s32.totalorder %s74, %s75
      %p87 = scmp.eq.s32.totalorder %s23, 1
      %p88 = por %p86, %p87
      %p90 = scmp.ne.s32.totalorder %s75, %s89
      %p91 = scmp.eq.s32.totalorder %s23, 0
      %p92 = por %p90, %p91
      %s94 = sadd.s32 %s93, 1
      %p97 = scmp.eq.s32.totalorder %s17, 1
      %p98 = scmp.ne.s32.totalorder %s93, %s95
      %p99 = scmp.eq.s32.totalorder %s17, 0
      %p100 = por %p98, %p99
      %p101 = scmp.ne.s32.totalorder %s93, %s95
      %p102 = scmp.eq.s32.totalorder %s22, 1
      %p103 = por %p101, %p102
      %p104 = scmp.ne.s32.totalorder %s95, %s96
      %p105 = scmp.eq.s32.totalorder %s22, 0
      %p106 = por %p104, %p105
      %p107 = scmp.ne.s32.totalorder %s95, %s96
      %p108 = scmp.eq.s32.totalorder %s23, 1
      %p109 = por %p107, %p108
      %p111 = scmp.ne.s32.totalorder %s96, %s110
      %p112 = scmp.eq.s32.totalorder %s23, 0
      %p113 = por %p111, %p112
      %s114 = ssub.s32 %s17, %s24
      %p115 = scmp.eq.s32.totalorder %s114, 0
      %s117 = sadd.s32 %s116, 1
      %s118 = scalar_select %p115, %s116, %s117
      %p121 = pneg %p115
      %p122 = scmp.eq.s32.totalorder %s17, 1
      %p123 = por %p121, %p122
      %p124 = scmp.ne.s32.totalorder %s116, %s119
      %p125 = scmp.eq.s32.totalorder %s17, 0
      %p126 = por %p124, %p125
      %p127 = scmp.ne.s32.totalorder %s116, %s119
      %p128 = scmp.eq.s32.totalorder %s22, 1
      %p129 = por %p127, %p128
      %p130 = scmp.ne.s32.totalorder %s119, %s120
      %p131 = scmp.eq.s32.totalorder %s22, 0
      %p132 = por %p130, %p131
      %p133 = scmp.ne.s32.totalorder %s119, %s120
      %p134 = scmp.eq.s32.totalorder %s23, 1
      %p135 = por %p133, %p134
      %p137 = scmp.ne.s32.totalorder %s120, %s136
      %p138 = scmp.eq.s32.totalorder %s23, 0
      %p139 = por %p137, %p138
      %p140 = scmp.le.s32.totalorder 1, %s17
      %p141 = scmp.lt.s32.totalorder %s17, 3
      %p142 = pnand %p140, %p141
      %p143 = pneg %p142
      // Predicated region
      $region9: #{tpu_custom_call.1} parent=5 // pred_check
        _
      $region10: #{tpu_custom_call.1} parent=5 // pred_check_branch
        %145 = sbr.rel (%p142) target = $region12
      $region11: #{tpu_custom_call.1} parent=5 // pred_region
        %s146 = ssub.s32 %s17, 1
        // Predicated region
        $region13: #{tpu_custom_call.1} parent=11 // pred_check
          %p147 = pneg %p64
        $region14: #{tpu_custom_call.1} parent=11 // pred_check_branch
          %149 = sbr.rel (%p147) target = $region16
        $region15: #{tpu_custom_call.1} parent=11 // pred_region
          _
        $region16: #{tpu_custom_call.1} parent=11 // pred_fallthru
          _
        // Predicated region
        $region17: #{tpu_custom_call.1} parent=11 // pred_check
          %p150 = pneg %p85
        $region18: #{tpu_custom_call.1} parent=11 // pred_check_branch
          %152 = sbr.rel (%p150) target = $region20
        $region19: #{tpu_custom_call.1} parent=11 // pred_region
          %154 = vsyncadd [#allocation6], 0
          %s156 = sshll.u32 %s2, 4
          %s157 = int_to_ptr.hbm [resolvable:$true] %s156
          %s158 = sshll.u32 [#allocation5], 4
          %s159 = int_to_ptr.vmem [resolvable:$true] %s158
          %161 = dma.hbm_to_vmem [thread:$0]  %s157, 128, %s159, [#allocation6]
        $region20: #{tpu_custom_call.1} parent=11 // pred_fallthru
          _
        // Predicated region
        $region21: #{tpu_custom_call.1} parent=11 // pred_check
          %p162 = pneg %p106
        $region22: #{tpu_custom_call.1} parent=11 // pred_check_branch
          %164 = sbr.rel (%p162) target = $region24
        $region23: #{tpu_custom_call.1} parent=11 // pred_region
          _
        $region24: #{tpu_custom_call.1} parent=11 // pred_fallthru
          _
      $region12: #{tpu_custom_call.1} parent=5 // pred_fallthru
        _
      %p165 = scmp.lt.s32.totalorder %s17, 2
      // Predicated region
      $region25: #{tpu_custom_call.1} parent=5 // pred_check
        %p166 = pneg %p165
      $region26: #{tpu_custom_call.1} parent=5 // pred_check_branch
        %168 = sbr.rel (%p166) target = $region28
      $region27: #{tpu_custom_call.1} parent=5 // pred_region
        // Predicated region
        $region29: #{tpu_custom_call.1} parent=27 // pred_check
          %p169 = pneg %p37
        $region30: #{tpu_custom_call.1} parent=27 // pred_check_branch
          %171 = sbr.rel (%p169) target = $region32
        $region31: #{tpu_custom_call.1} parent=27 // pred_region
          %s172 = sand.u32 %s27, 1
          %s173 = scalar_lea.sflag [#allocation3], %s172
          %s174 = sand.u32 %s27, 1
          %s175 = smul.addr %s174, 32
          %s176 = scalar_lea.vmem [#allocation2], %s175
          %s177 = smul.u32 4, %s17
          %179 = vsyncadd %s173, 0
          %s180 = smul.addr %s177, 8
          %s181 = scalar_lea.hbm %s0, %s180
          %s182 = sshll.u32 %s181, 4
          %s183 = int_to_ptr.hbm [resolvable:$true] %s182
          %s184 = sshll.u32 %s176, 4
          %s185 = int_to_ptr.vmem [resolvable:$true] %s184
          %190 = dma.hbm_to_vmem [thread:$0]  %s183, 512, %s185, %s173, 128, 128, 8
        $region32: #{tpu_custom_call.1} parent=27 // pred_fallthru
          _
      $region28: #{tpu_custom_call.1} parent=5 // pred_fallthru
        _
      %p191 = scmp.le.s32.totalorder 1, %s17
      %p192 = scmp.lt.s32.totalorder %s17, 3
      %p193 = pnand %p191, %p192
      %p194 = pneg %p193
      // Predicated region
      $region33: #{tpu_custom_call.1} parent=5 // pred_check
        _
      $region34: #{tpu_custom_call.1} parent=5 // pred_check_branch
        %196 = sbr.rel (%p193) target = $region36
      $region35: #{tpu_custom_call.1} parent=5 // pred_region
        %s197 = ssub.s32 %s17, 1
        %s198 = sand.u32 %s30, 1
        %s199 = scalar_lea.sflag [#allocation3], %s198
        %s200 = sand.u32 %s30, 1
        %s201 = smul.addr %s200, 32
        %s202 = scalar_lea.vmem [#allocation2], %s201
        // Predicated region
        $region37: #{tpu_custom_call.1} parent=35 // pred_check
          %p203 = pneg %p43
        $region38: #{tpu_custom_call.1} parent=35 // pred_check_branch
          %205 = sbr.rel (%p203) target = $region40
        $region39: #{tpu_custom_call.1} parent=35 // pred_region
          %207 = dma.done %s199, 512
        $region40: #{tpu_custom_call.1} parent=35 // pred_fallthru
          _
        // Predicated region
        $region41: #{tpu_custom_call.1} parent=35 // pred_check
          %p208 = pneg %p85
        $region42: #{tpu_custom_call.1} parent=35 // pred_check_branch
          %210 = sbr.rel (%p208) target = $region44
        $region43: #{tpu_custom_call.1} parent=35 // pred_region
          %212 = dma.done [#allocation6], 128
        $region44: #{tpu_custom_call.1} parent=35 // pred_fallthru
          _
        %s213 = sand.u32 %s30, 1
        %s214 = scalar_lea.sflag [#allocation3], %s213
        %s215 = sand.u32 %s30, 1
        %s216 = smul.addr %s215, 32
        %s217 = scalar_lea.vmem [#allocation2], %s216
        %p218 = pneg %p43
        %p219 = pneg %p40
        %p220 = pneg %p64
        %p221 = pneg %p61
        %p222 = pneg %p85
        %p223 = pneg %p82
        %p224 = pneg %p106
        %p225 = pneg %p103
        %p226 = pneg %p132
        %p227 = pneg %p129
        %s228 = sand.u32 %s119, 1
        %s229 = scalar_lea.sflag [#allocation4], %s228
        %s230 = sand.u32 %s119, 1
        %s231 = smul.addr %s230, 32
        %s232 = scalar_lea.vmem [#allocation7], %s231
        %s233 = smul.u32 4, %s22
        %s234 = smul.u32 4, %s22
        %v235 = vld [vmem:[%s3] sm:$0xff]
        %v236 = vld [vmem:[%s1] sm:$0xff]
        %v237 = vld [vmem:[#allocation5] sm:$0xff]
        %v238 = vld [vmem:[%s202] sm:$0xff]
        %s239 = scalar_lea.vmem %s202, 8 [#allocation2]
        %v240 = vld [vmem:[%s239] sm:$0xff]
        %s241 = scalar_lea.vmem %s202, 16 [#allocation2]
        %v242 = vld [vmem:[%s241] sm:$0xff]
        %s243 = scalar_lea.vmem %s202, 24 [#allocation2]
        %v244 = vld [vmem:[%s243] sm:$0xff]
        %v245 = vlaneseq
        %v246 = vand.u32 %v245, 127
        %v247 = vadd.s32 %v246, 128
        %v248 = vadd.s32 %v246, 256
        %v249 = vadd.s32 %v246, 384
        %vm250 = vcmp.lt.s32.totalorder %v246, 0
        %v251 = vsub.s32 0, %v246
        %v252 = vsel %vm250, %v251, %v246
        %v253 = vshrl.u32 %v252, 7
        %v254 = vand.u32 %v252, 127
        %v255 = vsub.s32 0, %v254
        %v256 = vsel %vm250, %v255, %v254
        %vm257 = vcmp.lt.s32.totalorder %v247, 0
        %v258 = vsub.s32 0, %v247
        %v259 = vsel %vm257, %v258, %v247
        %v260 = vshrl.u32 %v259, 7
        %v261 = vand.u32 %v259, 127
        %v262 = vsub.s32 0, %v261
        %v263 = vsel %vm257, %v262, %v261
        %vm264 = vcmp.lt.s32.totalorder %v248, 0
        %v265 = vsub.s32 0, %v248
        %v266 = vsel %vm264, %v265, %v248
        %v267 = vshrl.u32 %v266, 7
        %v268 = vand.u32 %v266, 127
        %v269 = vsub.s32 0, %v268
        %v270 = vsel %vm264, %v269, %v268
        %vm271 = vcmp.lt.s32.totalorder %v249, 0
        %v272 = vsub.s32 0, %v249
        %v273 = vsel %vm271, %v272, %v249
        %v274 = vshrl.u32 %v273, 7
        %v275 = vand.u32 %v273, 127
        %v276 = vsub.s32 0, %v275
        %v277 = vsel %vm271, %v276, %v275
        %vm278 = vcmp.ne.s32.totalorder %v256, 0
        %vm279 = vcmp.ne.s32.totalorder %v263, 0
        %vm280 = vcmp.ne.s32.totalorder %v270, 0
        %vm281 = vcmp.ne.s32.totalorder %v277, 0
        %vm282 = vcmp.lt.s32.totalorder %v256, 0
        %vm283 = vcmp.lt.s32.totalorder %v263, 0
        %vm284 = vcmp.lt.s32.totalorder %v270, 0
        %vm285 = vcmp.lt.s32.totalorder %v277, 0
        %vm286 = vmand %vm282, %vm278
        %vm287 = vmand %vm283, %vm279
        %vm288 = vmand %vm284, %vm280
        %vm289 = vmand %vm285, %vm281
        %v290 = vadd.s32 %v256, 128
        %v291 = vadd.s32 %v263, 128
        %v292 = vadd.s32 %v270, 128
        %v293 = vadd.s32 %v277, 128
        %v294 = vsel %vm286, %v290, %v256
        %v295 = vsel %vm287, %v291, %v263
        %v296 = vsel %vm288, %v292, %v270
        %v297 = vsel %vm289, %v293, %v277
        %vm298 = vcmp.ge.s32.totalorder %v294, 2
        %vm299 = vcmp.ge.s32.totalorder %v295, 2
        %vm300 = vcmp.ge.s32.totalorder %v296, 2
        %vm301 = vcmp.ge.s32.totalorder %v297, 2
        %vm302 = vcmp.ge.s32.totalorder %v294, 1
        %vm303 = vcmp.ge.s32.totalorder %v295, 1
        %vm304 = vcmp.ge.s32.totalorder %v296, 1
        %vm305 = vcmp.ge.s32.totalorder %v297, 1
        %vm306 = vcmp.lt.s32.totalorder %v294, 127
        %vm307 = vcmp.lt.s32.totalorder %v295, 127
        %vm308 = vcmp.lt.s32.totalorder %v296, 127
        %vm309 = vcmp.lt.s32.totalorder %v297, 127
        %vm310 = vcmp.lt.s32.totalorder %v294, 126
        %vm311 = vcmp.lt.s32.totalorder %v295, 126
        %vm312 = vcmp.lt.s32.totalorder %v296, 126
        %vm313 = vcmp.lt.s32.totalorder %v297, 126
        %314 = vrot.lane.b32.xlu0 %v238, 2
        %v315 = vpop.permute.xlu0 %314
        %316 = vrot.lane.b32.xlu0 %v240, 2
        %v317 = vpop.permute.xlu0 %316
        %318 = vrot.lane.b32.xlu0 %v242, 2
        %v319 = vpop.permute.xlu0 %318
        %320 = vrot.lane.b32.xlu0 %v244, 2
        %v321 = vpop.permute.xlu0 %320
        %vm322 = vcmp.lt.s32.totalorder %v246, 2
        %v323 = vsel %vm322, %v319, %v321
        %v324 = vsel %vm322, %v317, %v319
        %v325 = vsel %vm322, %v315, %v317
        %v326 = vsel %vm322, %v321, %v315
        %v327 = vsel %vm298, %v326, 0.0
        %v328 = vsel %vm299, %v325, 0.0
        %v329 = vsel %vm300, %v324, 0.0
        %v330 = vsel %vm301, %v323, 0.0
        %331 = vrot.lane.b32.xlu0 %v238, 1
        %v332 = vpop.permute.xlu0 %331
        %333 = vrot.lane.b32.xlu0 %v240, 1
        %v334 = vpop.permute.xlu0 %333
        %335 = vrot.lane.b32.xlu0 %v242, 1
        %v336 = vpop.permute.xlu0 %335
        %337 = vrot.lane.b32.xlu0 %v244, 1
        %v338 = vpop.permute.xlu0 %337
        %vm339 = vcmp.lt.s32.totalorder %v246, 1
        %v340 = vsel %vm339, %v336, %v338
        %v341 = vsel %vm339, %v334, %v336
        %v342 = vsel %vm339, %v332, %v334
        %v343 = vsel %vm339, %v338, %v332
        %v344 = vsel %vm302, %v343, 0.0
        %v345 = vsel %vm303, %v342, 0.0
        %v346 = vsel %vm304, %v341, 0.0
        %v347 = vsel %vm305, %v340, 0.0
        %348 = vrot.lane.b32.xlu0 %v238, 127
        %v349 = vpop.permute.xlu0 %348
        %350 = vrot.lane.b32.xlu0 %v240, 127
        %v351 = vpop.permute.xlu0 %350
        %352 = vrot.lane.b32.xlu0 %v242, 127
        %v353 = vpop.permute.xlu0 %352
        %354 = vrot.lane.b32.xlu0 %v244, 127
        %v355 = vpop.permute.xlu0 %354
        %vm356 = vcmp.lt.s32.totalorder %v246, 127
        %v357 = vsel %vm356, %v353, %v355
        %v358 = vsel %vm356, %v351, %v353
        %v359 = vsel %vm356, %v349, %v351
        %v360 = vsel %vm356, %v355, %v349
        %v361 = vsel %vm306, %v359, 0.0
        %v362 = vsel %vm307, %v358, 0.0
        %v363 = vsel %vm308, %v357, 0.0
        %v364 = vsel %vm309, %v360, 0.0
        %365 = vrot.lane.b32.xlu0 %v238, 126
        %v366 = vpop.permute.xlu0 %365
        %367 = vrot.lane.b32.xlu0 %v240, 126
        %v368 = vpop.permute.xlu0 %367
        %369 = vrot.lane.b32.xlu0 %v242, 126
        %v370 = vpop.permute.xlu0 %369
        %371 = vrot.lane.b32.xlu0 %v244, 126
        %v372 = vpop.permute.xlu0 %371
        %vm373 = vcmp.lt.s32.totalorder %v246, 126
        %v374 = vsel %vm373, %v370, %v372
        %v375 = vsel %vm373, %v368, %v370
        %v376 = vsel %vm373, %v366, %v368
        %v377 = vsel %vm373, %v372, %v366
        %v378 = vsel %vm310, %v376, 0.0
        %v379 = vsel %vm311, %v375, 0.0
        %v380 = vsel %vm312, %v374, 0.0
        %v381 = vsel %vm313, %v377, 0.0
        %383 = vset.pattern.permute.xlu0 0
        %384 = vperm.xlu0 %383, %v235
        %v385 = vpop.permute.xlu0 %384
        %vm387 = vcmask 326656
        %v389 = vsel %vm387, %v236, 0
        %391 = vmatpush.msra.mxu0 0.0
        %392 = vmatpush.msra.mxu0 0.0
        %393 = vmatpush.msra.mxu0 0.0
        %394 = vmatpush.msra.mxu0 0.0
        %395 = vmatpush.msra.mxu0 0.0
        %396 = vmatpush.msra.mxu0 0.0
        %397 = vmatpush.msra.mxu0 0.0
        %398 = vmatpush.msra.mxu0 0.0
        %399 = vmatpush.msra.mxu0 0.0
        %400 = vmatpush.msra.mxu0 0.0
        %401 = vmatpush.msra.mxu0 0.0
        %402 = vmatpush.msra.mxu0 %v378
        %403 = vmatpush.msra.mxu0 %v361
        %404 = vmatpush.msra.mxu0 %v238
        %405 = vmatpush.msra.mxu0 %v344
        %406 = vmatpush.msra.mxu0 %v327
        %407 = vmatmul.f32.gmra.mxu0 %v389
        %v408 = vpop.f32.mrf.mxu0
        %v409 = vadd.f32 %v385, %v408
        %410 = vdwg.mxu0
        %411 = vmatpush.msra.mxu0 0.0
        %412 = vmatpush.msra.mxu0 0.0
        %413 = vmatpush.msra.mxu0 0.0
        %414 = vmatpush.msra.mxu0 0.0
        %415 = vmatpush.msra.mxu0 0.0
        %416 = vmatpush.msra.mxu0 0.0
        %417 = vmatpush.msra.mxu0 0.0
        %418 = vmatpush.msra.mxu0 0.0
        %419 = vmatpush.msra.mxu0 0.0
        %420 = vmatpush.msra.mxu0 0.0
        %421 = vmatpush.msra.mxu0 0.0
        %422 = vmatpush.msra.mxu0 %v379
        %423 = vmatpush.msra.mxu0 %v362
        %424 = vmatpush.msra.mxu0 %v240
        %425 = vmatpush.msra.mxu0 %v345
        %426 = vmatpush.msra.mxu0 %v328
        %427 = vmatmul.f32.gmra.mxu0 %v389
        %v428 = vpop.f32.mrf.mxu0
        %v429 = vadd.f32 %v385, %v428
        %430 = vdwg.mxu0
        %431 = vmatpush.msra.mxu0 0.0
        %432 = vmatpush.msra.mxu0 0.0
        %433 = vmatpush.msra.mxu0 0.0
        %434 = vmatpush.msra.mxu0 0.0
        %435 = vmatpush.msra.mxu0 0.0
        %436 = vmatpush.msra.mxu0 0.0
        %437 = vmatpush.msra.mxu0 0.0
        %438 = vmatpush.msra.mxu0 0.0
        %439 = vmatpush.msra.mxu0 0.0
        %440 = vmatpush.msra.mxu0 0.0
        %441 = vmatpush.msra.mxu0 0.0
        %442 = vmatpush.msra.mxu0 %v380
        %443 = vmatpush.msra.mxu0 %v363
        %444 = vmatpush.msra.mxu0 %v242
        %445 = vmatpush.msra.mxu0 %v346
        %446 = vmatpush.msra.mxu0 %v329
        %447 = vmatmul.f32.gmra.mxu0 %v389
        %v448 = vpop.f32.mrf.mxu0
        %v449 = vadd.f32 %v385, %v448
        %450 = vdwg.mxu0
        %451 = vmatpush.msra.mxu0 0.0
        %452 = vmatpush.msra.mxu0 0.0
        %453 = vmatpush.msra.mxu0 0.0
        %454 = vmatpush.msra.mxu0 0.0
        %455 = vmatpush.msra.mxu0 0.0
        %456 = vmatpush.msra.mxu0 0.0
        %457 = vmatpush.msra.mxu0 0.0
        %458 = vmatpush.msra.mxu0 0.0
        %459 = vmatpush.msra.mxu0 0.0
        %460 = vmatpush.msra.mxu0 0.0
        %461 = vmatpush.msra.mxu0 0.0
        %462 = vmatpush.msra.mxu0 %v381
        %463 = vmatpush.msra.mxu0 %v364
        %464 = vmatpush.msra.mxu0 %v244
        %465 = vmatpush.msra.mxu0 %v347
        %466 = vmatpush.msra.mxu0 %v330
        %467 = vmatmul.f32.gmra.mxu0 %v389
        %v468 = vpop.f32.mrf.mxu0
        %v469 = vadd.f32 %v385, %v468
        %470 = vdwg.mxu0
        %v471 = vmul.f32 %v409, 0.01
        %v472 = vmul.f32 %v429, 0.01
        %v473 = vmul.f32 %v449, 0.01
        %v474 = vmul.f32 %v469, 0.01
        %v475 = vmax.f32 %v409, %v471
        %v476 = vmax.f32 %v429, %v472
        %v477 = vmax.f32 %v449, %v473
        %v478 = vmax.f32 %v469, %v474
        %479 = vrot.lane.b32.xlu0 %v475, 2
        %v480 = vpop.permute.xlu0 %479
        %481 = vrot.lane.b32.xlu0 %v476, 2
        %v482 = vpop.permute.xlu0 %481
        %483 = vrot.lane.b32.xlu0 %v477, 2
        %v484 = vpop.permute.xlu0 %483
        %485 = vrot.lane.b32.xlu0 %v478, 2
        %v486 = vpop.permute.xlu0 %485
        %v487 = vsel %vm322, %v484, %v486
        %v488 = vsel %vm322, %v482, %v484
        %v489 = vsel %vm322, %v480, %v482
        %v490 = vsel %vm322, %v486, %v480
        %v491 = vsel %vm298, %v490, 0.0
        %v492 = vsel %vm299, %v489, 0.0
        %v493 = vsel %vm300, %v488, 0.0
        %v494 = vsel %vm301, %v487, 0.0
        %495 = vrot.lane.b32.xlu0 %v475, 1
        %v496 = vpop.permute.xlu0 %495
        %497 = vrot.lane.b32.xlu0 %v476, 1
        %v498 = vpop.permute.xlu0 %497
        %499 = vrot.lane.b32.xlu0 %v477, 1
        %v500 = vpop.permute.xlu0 %499
        %501 = vrot.lane.b32.xlu0 %v478, 1
        %v502 = vpop.permute.xlu0 %501
        %v503 = vsel %vm339, %v500, %v502
        %v504 = vsel %vm339, %v498, %v500
        %v505 = vsel %vm339, %v496, %v498
        %v506 = vsel %vm339, %v502, %v496
        %v507 = vsel %vm302, %v506, 0.0
        %v508 = vsel %vm303, %v505, 0.0
        %v509 = vsel %vm304, %v504, 0.0
        %v510 = vsel %vm305, %v503, 0.0
        %511 = vrot.lane.b32.xlu0 %v475, 127
        %v512 = vpop.permute.xlu0 %511
        %513 = vrot.lane.b32.xlu0 %v476, 127
        %v514 = vpop.permute.xlu0 %513
        %515 = vrot.lane.b32.xlu0 %v477, 127
        %v516 = vpop.permute.xlu0 %515
        %517 = vrot.lane.b32.xlu0 %v478, 127
        %v518 = vpop.permute.xlu0 %517
        %v519 = vsel %vm356, %v516, %v518
        %v520 = vsel %vm356, %v514, %v516
        %v521 = vsel %vm356, %v512, %v514
        %v522 = vsel %vm356, %v518, %v512
        %v523 = vsel %vm306, %v521, 0.0
        %v524 = vsel %vm307, %v520, 0.0
        %v525 = vsel %vm308, %v519, 0.0
        %v526 = vsel %vm309, %v522, 0.0
        %527 = vrot.lane.b32.xlu0 %v475, 126
        %v528 = vpop.permute.xlu0 %527
        %529 = vrot.lane.b32.xlu0 %v476, 126
        %v530 = vpop.permute.xlu0 %529
        %531 = vrot.lane.b32.xlu0 %v477, 126
        %v532 = vpop.permute.xlu0 %531
        %533 = vrot.lane.b32.xlu0 %v478, 126
        %v534 = vpop.permute.xlu0 %533
        %v535 = vsel %vm373, %v532, %v534
        %v536 = vsel %vm373, %v530, %v532
        %v537 = vsel %vm373, %v528, %v530
        %v538 = vsel %vm373, %v534, %v528
        %v539 = vsel %vm310, %v537, 0.0
        %v540 = vsel %vm311, %v536, 0.0
        %v541 = vsel %vm312, %v535, 0.0
        %v542 = vsel %vm313, %v538, 0.0
        %543 = vset.pattern.permute.xlu0 1
        %544 = vperm.xlu0 %543, %v235
        %v545 = vpop.permute.xlu0 %544
        %v548 = vsel %vm387, %v237, 0
        %550 = vmatpush.msra.mxu0 0.0
        %551 = vmatpush.msra.mxu0 0.0
        %552 = vmatpush.msra.mxu0 0.0
        %553 = vmatpush.msra.mxu0 0.0
        %554 = vmatpush.msra.mxu0 0.0
        %555 = vmatpush.msra.mxu0 0.0
        %556 = vmatpush.msra.mxu0 0.0
        %557 = vmatpush.msra.mxu0 0.0
        %558 = vmatpush.msra.mxu0 0.0
        %559 = vmatpush.msra.mxu0 0.0
        %560 = vmatpush.msra.mxu0 0.0
        %561 = vmatpush.msra.mxu0 %v539
        %562 = vmatpush.msra.mxu0 %v523
        %563 = vmatpush.msra.mxu0 %v475
        %564 = vmatpush.msra.mxu0 %v507
        %565 = vmatpush.msra.mxu0 %v491
        %566 = vmatmul.f32.gmra.mxu0 %v548
        %v567 = vpop.f32.mrf.mxu0
        %v568 = vadd.f32 %v545, %v567
        %569 = vdwg.mxu0
        %570 = vmatpush.msra.mxu0 0.0
        %571 = vmatpush.msra.mxu0 0.0
        %572 = vmatpush.msra.mxu0 0.0
        %573 = vmatpush.msra.mxu0 0.0
        %574 = vmatpush.msra.mxu0 0.0
        %575 = vmatpush.msra.mxu0 0.0
        %576 = vmatpush.msra.mxu0 0.0
        %577 = vmatpush.msra.mxu0 0.0
        %578 = vmatpush.msra.mxu0 0.0
        %579 = vmatpush.msra.mxu0 0.0
        %580 = vmatpush.msra.mxu0 0.0
        %581 = vmatpush.msra.mxu0 %v540
        %582 = vmatpush.msra.mxu0 %v524
        %583 = vmatpush.msra.mxu0 %v476
        %584 = vmatpush.msra.mxu0 %v508
        %585 = vmatpush.msra.mxu0 %v492
        %586 = vmatmul.f32.gmra.mxu0 %v548
        %v587 = vpop.f32.mrf.mxu0
        %v588 = vadd.f32 %v545, %v587
        %589 = vdwg.mxu0
        %590 = vmatpush.msra.mxu0 0.0
        %591 = vmatpush.msra.mxu0 0.0
        %592 = vmatpush.msra.mxu0 0.0
        %593 = vmatpush.msra.mxu0 0.0
        %594 = vmatpush.msra.mxu0 0.0
        %595 = vmatpush.msra.mxu0 0.0
        %596 = vmatpush.msra.mxu0 0.0
        %597 = vmatpush.msra.mxu0 0.0
        %598 = vmatpush.msra.mxu0 0.0
        %599 = vmatpush.msra.mxu0 0.0
        %600 = vmatpush.msra.mxu0 0.0
        %601 = vmatpush.msra.mxu0 %v541
        %602 = vmatpush.msra.mxu0 %v525
        %603 = vmatpush.msra.mxu0 %v477
        %604 = vmatpush.msra.mxu0 %v509
        %605 = vmatpush.msra.mxu0 %v493
        %606 = vmatmul.f32.gmra.mxu0 %v548
        %v607 = vpop.f32.mrf.mxu0
        %v608 = vadd.f32 %v545, %v607
        %609 = vdwg.mxu0
        %610 = vmatpush.msra.mxu0 0.0
        %611 = vmatpush.msra.mxu0 0.0
        %612 = vmatpush.msra.mxu0 0.0
        %613 = vmatpush.msra.mxu0 0.0
        %614 = vmatpush.msra.mxu0 0.0
        %615 = vmatpush.msra.mxu0 0.0
        %616 = vmatpush.msra.mxu0 0.0
        %617 = vmatpush.msra.mxu0 0.0
        %618 = vmatpush.msra.mxu0 0.0
        %619 = vmatpush.msra.mxu0 0.0
        %620 = vmatpush.msra.mxu0 0.0
        %621 = vmatpush.msra.mxu0 %v542
        %622 = vmatpush.msra.mxu0 %v526
        %623 = vmatpush.msra.mxu0 %v478
        %624 = vmatpush.msra.mxu0 %v510
        %625 = vmatpush.msra.mxu0 %v494
        %626 = vmatmul.f32.gmra.mxu0 %v548
        %v627 = vpop.f32.mrf.mxu0
        %v628 = vadd.f32 %v545, %v627
        %629 = vdwg.mxu0
        %v630 = vmul.f32 %v568, 0.01
        %v631 = vmul.f32 %v588, 0.01
        %v632 = vmul.f32 %v608, 0.01
        %v633 = vmul.f32 %v628, 0.01
        %v634 = vmax.f32 %v568, %v630
        %v635 = vmax.f32 %v588, %v631
        %v636 = vmax.f32 %v608, %v632
        %v637 = vmax.f32 %v628, %v633
        %v638 = vadd.f32 %v634, %v238
        %v639 = vadd.f32 %v635, %v240
        %v640 = vadd.f32 %v636, %v242
        %v641 = vadd.f32 %v637, %v244
        %642 = vst [vmem:[%s232] sm:$0xff] %v638
        %s643 = scalar_lea.vmem %s232, 8 [#allocation7]
        %644 = vst [vmem:[%s643] sm:$0xff] %v639
        %s645 = scalar_lea.vmem %s232, 16 [#allocation7]
        %646 = vst [vmem:[%s645] sm:$0xff] %v640
        %s647 = scalar_lea.vmem %s232, 24 [#allocation7]
        %648 = vst [vmem:[%s647] sm:$0xff] %v641
        %s649 = sand.u32 %s119, 1
        %s650 = scalar_lea.sflag [#allocation4], %s649
        %s651 = sand.u32 %s119, 1
        %s652 = smul.addr %s651, 32
        %s653 = scalar_lea.vmem [#allocation7], %s652
        // Predicated region
        $region45: #{tpu_custom_call.1} parent=35 // pred_check
          %p654 = pneg %p129
        $region46: #{tpu_custom_call.1} parent=35 // pred_check_branch
          %656 = sbr.rel (%p654) target = $region48
        $region47: #{tpu_custom_call.1} parent=35 // pred_region
          %s657 = smul.u32 4, %s22
          %659 = vsyncadd %s650, 0
          %s660 = smul.addr %s657, 8
          %s661 = scalar_lea.hbm %s4, %s660
          %s662 = sshll.u32 %s653, 4
          %s663 = int_to_ptr.vmem [resolvable:$true] %s662
          %s664 = sshll.u32 %s661, 4
          %s665 = int_to_ptr.hbm [resolvable:$true] %s664
          %670 = dma.vmem_to_hbm [thread:$0]  %s663, 512, %s665, %s650, 128, 128, 8
        $region48: #{tpu_custom_call.1} parent=35 // pred_fallthru
          _
      $region36: #{tpu_custom_call.1} parent=5 // pred_fallthru
        _
      %p671 = scmp.le.s32.totalorder 2, %s17
      // Predicated region
      $region49: #{tpu_custom_call.1} parent=5 // pred_check
        %p672 = pneg %p671
      $region50: #{tpu_custom_call.1} parent=5 // pred_check_branch
        %674 = sbr.rel (%p672) target = $region52
      $region51: #{tpu_custom_call.1} parent=5 // pred_region
        %s675 = ssub.s32 %s17, 2
        // Predicated region
        $region53: #{tpu_custom_call.1} parent=51 // pred_check
          %p676 = pneg %p135
        $region54: #{tpu_custom_call.1} parent=51 // pred_check_branch
          %678 = sbr.rel (%p676) target = $region56
        $region55: #{tpu_custom_call.1} parent=51 // pred_region
          %s679 = sand.u32 %s120, 1
          %s680 = scalar_lea.sflag [#allocation4], %s679
          %s681 = sand.u32 %s120, 1
          %s682 = smul.addr %s681, 32
          %s683 = scalar_lea.vmem [#allocation7], %s682
          %685 = dma.done %s680, 512
        $region56: #{tpu_custom_call.1} parent=51 // pred_fallthru
          _
      $region52: #{tpu_custom_call.1} parent=5 // pred_fallthru
        _
    $region6: #{tpu_custom_call.1} parent=1 // loop_footer
      %s21 = sadd.s32 1, %s17
    $region7: #{tpu_custom_call.1} parent=1 // loop_footer_branch
      %16 = sbr.rel target = $region3
    $region8: #{tpu_custom_call.1} parent=1 // loop_exit
      _
    %686 = vsyncpa [#allocation3], 1
    %s687 = scalar_lea.sflag [#allocation3], 1
    %688 = vsyncpa %s687, 1
    %689 = vsyncpa [#allocation6], 1
    %690 = vsyncpa [#allocation4], 1
    %s691 = scalar_lea.sflag [#allocation4], 1
    %692 = vsyncpa %s691, 1

</llo_original>
